<compile_context>
chip_gen: v7x
topology: tpu7x:2x2x1
jax: 0.10.0
libtpu: 0.0.40
codegen_flags: <defaults>
</compile_context>

<pallas_src>
import functools

import jax
import jax.numpy as jnp
from jax.experimental import pallas as pl
from jax.experimental.pallas import tpu as pltpu


def _round_up(x: int, m: int) -> int:
    return ((x + m - 1) // m) * m


def _vmem_caps() -> tuple[int, int]:
    """(vmem_limit cap, tile-selection budget), sized per TPU generation."""
    try:
        phys = int(pltpu.get_tpu_info().vmem_capacity_bytes)
    except Exception:
        phys = 64 * 2**20                       # conservative (v7x) fallback
    cap = max(32 * 2**20, int(0.80 * phys))     # ~51 MiB on v7x, ~102 MiB on v5e/v6e
    return cap, int(0.70 * cap)


def _exp_dtype_for_backend():
    """bf16 exp on v6e/v7x (bf16 EUP ~2x f32 rate); f32 exp on v5e and older."""
    try:
        kind = jax.devices()[0].device_kind.lower()
    except Exception:
        return jnp.float32
    if any(v in kind for v in ("v2", "v3", "v4", "v5")):
        return jnp.float32
    return jnp.bfloat16


def _normalize_kernel(f1_ref, f2_ref, zi_ref, zj_ref, dg_ref, *, scale):
    """Prepass: normalize, fold 1/temperature into z_i, bf16 cast, diag logits."""
    f1 = f1_ref[...].astype(jnp.float32)                     # (Tp, D)
    f2 = f2_ref[...].astype(jnp.float32)                     # (Tp, D)

    # F.normalize(p=2, eps=1e-12) semantics: clamp sum(x^2) at 1e-24, rsqrt (EUP).
    inv1 = jax.lax.rsqrt(jnp.maximum(jnp.sum(f1 * f1, axis=1, keepdims=True), 1e-24))
    inv2 = jax.lax.rsqrt(jnp.maximum(jnp.sum(f2 * f2, axis=1, keepdims=True), 1e-24))

    zi = (f1 * (inv1 * scale)).astype(jnp.bfloat16)           # scale folded into z_i
    zj = (f2 * inv2).astype(jnp.bfloat16)
    zi_ref[...] = zi
    zj_ref[...] = zj

    # Positive-pair logits sim[i,i] (already includes 1/temperature), computed
    # from the SAME bf16 z's so bf16 rounding largely cancels in lse - diag.
    dg_ref[...] = jnp.sum(zi.astype(jnp.float32) * zj.astype(jnp.float32),
                          axis=1, keepdims=True)


def _infonce_tile_kernel(zi_ref, zj_ref, rs_ref, cp_ref, *, shift, exp_dtype):
    """One (row-block i, col-block j) tile of the similarity matrix.

    Outputs:
      rs_ref: (Tm, 1)    f32  running sum_j exp(sim - shift) per row (acc. over j)
      cp_ref: (1, 1, Tn) f32  this row-block's partial sum_i exp(sim - shift) per col
    """
    j = pl.program_id(1)

    # sim = (z_i @ z_j.T) / temperature (scale pre-folded into z_i); bf16 MXU
    # inputs, f32 accumulation, NT form (no materialized transpose).
    sim = jax.lax.dot_general(
        zi_ref[...], zj_ref[...],
        dimension_numbers=(((1,), (1,)), ((), ())),
        preferred_element_type=jnp.float32)                   # (Tm, Tn)

    # Single exp pass; fixed stabilizer shift = 1/temperature is safe because
    # |sim| <= 1/temperature after L2 normalization.  exp runs in bf16 on
    # v6e/v7x (exp_dtype), f32 elsewhere; sums always accumulate in f32.
    p = jnp.exp((sim - shift).astype(exp_dtype)).astype(jnp.float32)

    # Row sum-exp accumulator: output block is resident across the inner j axis.
    @pl.when(j == 0)
    def _():
        rs_ref[...] = jnp.zeros_like(rs_ref)
    rs_ref[...] += jnp.sum(p, axis=1, keepdims=True)
    # TODO(synk): if a bundle dump shows the XLU bound by this lane-direction
    # row sum, move it onto the MXU via p_bf16 @ ones (MXU has slack post-matmul).

    # Per-row-block partial column sum-exp (reduced across row blocks outside).
    cp_ref[0, :, :] = jnp.sum(p, axis=0, keepdims=True)


def infonce_loss(features1: jax.Array, features2: jax.Array,
                 temperature: float = 0.07) -> jax.Array:
    assert features1.shape == features2.shape and features1.ndim == 2, (
        features1.shape, features2.shape)
    B, D = features1.shape
    if B == 0:
        # Matches the PyTorch module's empty-batch early return.
        return jnp.float32(0.0)

    scale = 1.0 / float(temperature)
    # TODO(synk): the fixed stabilizer assumes exp(-2/temperature) does not
    # underflow the row sums to zero; for temperature < ~0.024 a running-max
    # (flash-softmax) path would be required.

    vmem_cap, tile_budget = _vmem_caps()
    exp_dtype = _exp_dtype_for_backend()
    in_item = features1.dtype.itemsize

    # ---- tile selection -----------------------------------------------------
    def tile_vmem_bytes(tm, tn):
        return (2 * tm * D * 2          # zi row block (bf16, double-buffered)
                + 2 * tn * D * 2        # zj col block (bf16, double-buffered)
                + 2 * (tm + tn) * 4     # rs / cp output blocks
                + 4 * tm * tn * 4)      # sim / exp f32 intermediates (+ slack)

    if B >= 256:
        tile_n = 256
        tile_m = 256
        # Grow the row tile while it fits the per-generation VMEM budget
        # (halves the re-fetched zj traffic and per-grid-step overhead), but
        # keep >= 2 row blocks so both v7x TensorCores get work.
        max_tm = max(256, _round_up(B, 256) // 2)
        for cand in (512, 1024, 2048):
            if cand <= max_tm and tile_vmem_bytes(cand, tile_n) <= tile_budget:
                tile_m = cand
        # TODO(synk): if even (256, 256) tiles exceed the budget (D >~ 16K on
        # v7x), add a D-tiling inner loop with an f32 sim accumulator.
    else:
        tile_m = tile_n = _round_up(B, 8)

    b_pad = _round_up(B, tile_m)
    n_pad = b_pad - B
    if n_pad:
        features1 = jnp.pad(features1, ((0, n_pad), (0, 0)))
        features2 = jnp.pad(features2, ((0, n_pad), (0, 0)))
    nr = b_pad // tile_m
    nc = b_pad // tile_n

    # ---- prepass: normalize + scale fold + bf16 cast + diagonal logits ------
    if B < 256:
        tile_p = b_pad
    else:
        tile_p = 256
        while tile_p > 8 and tile_p * D * (4 * in_item + 20) > tile_budget:
            tile_p //= 2     # powers of two <= 256 always divide b_pad

    prep_need = tile_p * D * (4 * in_item + 20) + 16 * tile_p
    prep_vmem = int(min(vmem_cap, max(32 * 2**20, 2 * prep_need)))
    prep_cost = pl.CostEstimate(
        flops=int(8 * b_pad * D),
        transcendentals=int(2 * b_pad),
        bytes_accessed=int(b_pad * D * (2 * in_item + 4) + b_pad * 4),
    )

    zi, zj, dg = pl.pallas_call(
        functools.partial(_normalize_kernel, scale=scale),
        grid=(b_pad // tile_p,),
        in_specs=[
            pl.BlockSpec((tile_p, D), lambda i: (i, 0)),
            pl.BlockSpec((tile_p, D), lambda i: (i, 0)),
        ],
        out_specs=(
            pl.BlockSpec((tile_p, D), lambda i: (i, 0)),
            pl.BlockSpec((tile_p, D), lambda i: (i, 0)),
            pl.BlockSpec((tile_p, 1), lambda i: (i, 0)),
        ),
        out_shape=(
            jax.ShapeDtypeStruct((b_pad, D), jnp.bfloat16),
            jax.ShapeDtypeStruct((b_pad, D), jnp.bfloat16),
            jax.ShapeDtypeStruct((b_pad, 1), jnp.float32),
        ),
        compiler_params=pltpu.CompilerParams(
            dimension_semantics=("parallel",),
            vmem_limit_bytes=prep_vmem,
        ),
        cost_estimate=prep_cost,
    )(features1, features2)

    # ---- tiled similarity / sum-exp kernel -----------------------------------
    need = tile_vmem_bytes(tile_m, tile_n)
    vmem_limit = int(min(vmem_cap, max(32 * 2**20, 2 * need)))
    tile_cost = pl.CostEstimate(
        flops=int(2 * b_pad * b_pad * D + 6 * b_pad * b_pad),
        transcendentals=int(b_pad * b_pad),
        # zi read once (block index constant across inner j), zj re-fetched once
        # per row block, plus the small rs / cp output streams.
        bytes_accessed=int(b_pad * D * 2 + nr * b_pad * D * 2
                           + nr * b_pad * 4 + b_pad * 4),
    )

    rs, cp = pl.pallas_call(
        functools.partial(_infonce_tile_kernel, shift=scale, exp_dtype=exp_dtype),
        grid=(nr, nc),
        in_specs=[
            pl.BlockSpec((tile_m, D), lambda i, j: (i, 0)),   # zi row block (bf16)
            pl.BlockSpec((tile_n, D), lambda i, j: (j, 0)),   # zj col block (bf16)
            # TODO(synk): on v5e, if the re-fetched zj DMA is still exposed,
            # add pipeline_mode=pl.Buffered(3) to the zj spec.
        ],
        out_specs=(
            pl.BlockSpec((tile_m, 1), lambda i, j: (i, 0)),        # row sum-exp
            pl.BlockSpec((1, 1, tile_n), lambda i, j: (i, 0, j)),  # col partials
        ),
        out_shape=(
            jax.ShapeDtypeStruct((b_pad, 1), jnp.float32),
            jax.ShapeDtypeStruct((nr, 1, b_pad), jnp.float32),
        ),
        compiler_params=pltpu.CompilerParams(
            dimension_semantics=("parallel", "arbitrary"),
            vmem_limit_bytes=vmem_limit,
        ),
        cost_estimate=tile_cost,
    )(zi, zj)

    # ---- O(B) epilogue in plain JAX ------------------------------------------
    # Zero-padded rows/cols have sim == 0 exactly, so each contributes exactly
    # exp(-scale) (evaluated in exp_dtype, same as the kernel) to every real
    # row/column sum — subtract that analytically.
    pad_unit = jnp.exp(jnp.asarray(-scale, dtype=exp_dtype)).astype(jnp.float32)
    pad_term = n_pad * pad_unit
    row_sum = rs[:B, 0] - pad_term
    col_sum = jnp.sum(cp, axis=(0, 1))[:B] - pad_term
    diag = dg[:B, 0]

    lse_r = jnp.log(row_sum) + scale
    lse_c = jnp.log(col_sum) + scale
    loss_ij = jnp.mean(lse_r - diag)
    loss_ji = jnp.mean(lse_c - diag)
    return 0.5 * (loss_ij + loss_ji)


def _reference_loss(f1, f2, temperature=0.07):
    # Pure-JAX f32 reference mirroring the PyTorch forward.
    f1 = f1.astype(jnp.float32)
    f2 = f2.astype(jnp.float32)
    z_i = f1 / jnp.maximum(jnp.linalg.norm(f1, axis=1, keepdims=True), 1e-12)
    z_j = f2 / jnp.maximum(jnp.linalg.norm(f2, axis=1, keepdims=True), 1e-12)
    sim = z_i @ z_j.T / temperature
    lse_r = jax.scipy.special.logsumexp(sim, axis=1)
    lse_c = jax.scipy.special.logsumexp(sim, axis=0)
    diag = jnp.diagonal(sim)
    return 0.5 * (jnp.mean(lse_r - diag) + jnp.mean(lse_c - diag))


if __name__ == "__main__":
    key = jax.random.PRNGKey(0)
    k1, k2 = jax.random.split(key)

    # Small single-tile case (matches the module's (B, D) 2-D feature inputs).
    B, D = 8, 32
    features1 = jax.random.normal(k1, (B, D), dtype=jnp.float32)
    features2 = jax.random.normal(k2, (B, D), dtype=jnp.float32)
    loss = infonce_loss(features1, features2, temperature=0.07)
    jax.block_until_ready(loss)
    ref = _reference_loss(features1, features2, temperature=0.07)
    assert jnp.isfinite(loss), "non-finite loss"
    # Tolerance accounts for bf16 MXU inputs / bf16 exp (f32 accumulation).
    assert jnp.allclose(loss, ref, rtol=5e-2, atol=5e-2), (loss, ref)

    # Multi-tile case: exercises padding, row-sum accumulation across the inner
    # grid axis, and the column-partial reduction in the epilogue.
    k3, k4 = jax.random.split(k2)
    B2, D2 = 384, 128
    g1 = jax.random.normal(k3, (B2, D2), dtype=jnp.float32)
    g2 = jax.random.normal(k4, (B2, D2), dtype=jnp.float32)
    loss2 = infonce_loss(g1, g2, temperature=0.07)
    jax.block_until_ready(loss2)
    ref2 = _reference_loss(g1, g2, temperature=0.07)
    assert jnp.isfinite(loss2), "non-finite loss (multi-tile)"
    assert jnp.allclose(loss2, ref2, rtol=5e-2, atol=5e-2), (loss2, ref2)

    print("KERNEL_OK")
</pallas_src>

<mosaic_0001>
module attributes {stable_mosaic.version = 11 : i64} {
  func.func @_normalize_kernel(%arg0: i32, %arg1: memref<8x32xf32, #tpu.memory_space<vmem>>, %arg2: memref<8x32xf32, #tpu.memory_space<vmem>>, %arg3: memref<8x32xbf16, #tpu.memory_space<vmem>>, %arg4: memref<8x32xbf16, #tpu.memory_space<vmem>>, %arg5: memref<8x1xf32, #tpu.memory_space<vmem>>) attributes {dimension_semantics = [#tpu.dimension_semantics<parallel>], iteration_bounds = array<i64: 1>, scalar_prefetch = 0 : i64, scratch_operands = 0 : i64, tpu.core_type = #tpu.core_type<tc>, window_params = [{transform_indices = @transform_0, window_bounds = array<i64: 8, 32>}, {transform_indices = @transform_1, window_bounds = array<i64: 8, 32>}, {transform_indices = @transform_2, window_bounds = array<i64: 8, 32>}, {transform_indices = @transform_3, window_bounds = array<i64: 8, 32>}, {transform_indices = @transform_4, window_bounds = array<i64: 8, 1>}]} {
    %c0 = arith.constant 0 : index
    %c0_0 = arith.constant 0 : index
    %0 = vector.load %arg1[%c0, %c0_0] : memref<8x32xf32, #tpu.memory_space<vmem>>, vector<8x32xf32>
    %c0_1 = arith.constant 0 : index
    %c0_2 = arith.constant 0 : index
    %1 = vector.load %arg2[%c0_1, %c0_2] : memref<8x32xf32, #tpu.memory_space<vmem>>, vector<8x32xf32>
    %2 = arith.mulf %0, %0 : vector<8x32xf32>
    %cst = arith.constant dense<0.000000e+00> : vector<8xf32>
    %3 = vector.multi_reduction <add>, %2, %cst [1] : vector<8x32xf32> to vector<8xf32>
    %4 = vector.shape_cast %3 : vector<8xf32> to vector<8x1xf32>
    %cst_3 = arith.constant 1.000000e-24 : f32
    %5 = vector.broadcast %cst_3 : f32 to vector<8x1xf32>
    %6 = arith.maximumf %4, %5 : vector<8x1xf32>
    %7 = math.rsqrt %6 : vector<8x1xf32>
    %8 = arith.mulf %1, %1 : vector<8x32xf32>
    %cst_4 = arith.constant dense<0.000000e+00> : vector<8xf32>
    %9 = vector.multi_reduction <add>, %8, %cst_4 [1] : vector<8x32xf32> to vector<8xf32>
    %10 = vector.shape_cast %9 : vector<8xf32> to vector<8x1xf32>
    %cst_5 = arith.constant 1.000000e-24 : f32
    %11 = vector.broadcast %cst_5 : f32 to vector<8x1xf32>
    %12 = arith.maximumf %10, %11 : vector<8x1xf32>
    %13 = math.rsqrt %12 : vector<8x1xf32>
    %cst_6 = arith.constant 14.2857141 : f32
    %14 = vector.broadcast %cst_6 : f32 to vector<8x1xf32>
    %15 = arith.mulf %7, %14 : vector<8x1xf32>
    %16 = vector.broadcast %15 : vector<8x1xf32> to vector<8x32xf32>
    %17 = arith.mulf %0, %16 : vector<8x32xf32>
    %18 = arith.truncf %17 : vector<8x32xf32> to vector<8x32xbf16>
    %19 = vector.broadcast %13 : vector<8x1xf32> to vector<8x32xf32>
    %20 = arith.mulf %1, %19 : vector<8x32xf32>
    %21 = arith.truncf %20 : vector<8x32xf32> to vector<8x32xbf16>
    %c0_7 = arith.constant 0 : index
    %c0_8 = arith.constant 0 : index
    %22 = vector.load %arg3[%c0_7, %c0_8] : memref<8x32xbf16, #tpu.memory_space<vmem>>, vector<8x32xbf16>
    tpu.vector_store %arg3[%c0_7, %c0_8], %18 {strides = array<i32>} : memref<8x32xbf16, #tpu.memory_space<vmem>>, vector<8x32xbf16>,
    %c0_9 = arith.constant 0 : index
    %c0_10 = arith.constant 0 : index
    %23 = vector.load %arg4[%c0_9, %c0_10] : memref<8x32xbf16, #tpu.memory_space<vmem>>, vector<8x32xbf16>
    tpu.vector_store %arg4[%c0_9, %c0_10], %21 {strides = array<i32>} : memref<8x32xbf16, #tpu.memory_space<vmem>>, vector<8x32xbf16>,
    %24 = arith.extf %18 : vector<8x32xbf16> to vector<8x32xf32>
    %25 = arith.extf %21 : vector<8x32xbf16> to vector<8x32xf32>
    %26 = arith.mulf %24, %25 : vector<8x32xf32>
    %cst_11 = arith.constant dense<0.000000e+00> : vector<8xf32>
    %27 = vector.multi_reduction <add>, %26, %cst_11 [1] : vector<8x32xf32> to vector<8xf32>
    %28 = vector.shape_cast %27 : vector<8xf32> to vector<8x1xf32>
    %c0_12 = arith.constant 0 : index
    %c0_13 = arith.constant 0 : index
    %29 = vector.load %arg5[%c0_12, %c0_13] : memref<8x1xf32, #tpu.memory_space<vmem>>, vector<8x1xf32>
    tpu.vector_store %arg5[%c0_12, %c0_13], %28 {strides = array<i32>} : memref<8x1xf32, #tpu.memory_space<vmem>>, vector<8x1xf32>,
    return
  }
  func.func @transform_0(%arg0: i32) -> (i32, i32) {
    %c0_i32 = arith.constant 0 : i32
    %c0_i32_0 = arith.constant 0 : i32
    return %arg0, %c0_i32 : i32, i32
  }
  func.func @transform_1(%arg0: i32) -> (i32, i32) {
    %c0_i32 = arith.constant 0 : i32
    %c0_i32_0 = arith.constant 0 : i32
    return %arg0, %c0_i32 : i32, i32
  }
  func.func @transform_2(%arg0: i32) -> (i32, i32) {
    %c0_i32 = arith.constant 0 : i32
    %c0_i32_0 = arith.constant 0 : i32
    return %arg0, %c0_i32 : i32, i32
  }
  func.func @transform_3(%arg0: i32) -> (i32, i32) {
    %c0_i32 = arith.constant 0 : i32
    %c0_i32_0 = arith.constant 0 : i32
    return %arg0, %c0_i32 : i32, i32
  }
  func.func @transform_4(%arg0: i32) -> (i32, i32) {
    %c0_i32 = arith.constant 0 : i32
    %c0_i32_0 = arith.constant 0 : i32
    return %arg0, %c0_i32 : i32, i32
  }
}

</mosaic_0001>

<llo_original>
// kernel: tpu_custom_call.1
$region0: #{tpu_custom_call.1}
  #allocation0 [shape = 'u32[]', space=smem, size = 0x4, offset = 0x4, fixed_abs, tag = 'smem constant byte address 0x4 - core index']
  #allocation1 [shape = 'u32[144,128]{1,0:T(1,128)}', space=vmem, size = 0x12000, scoped, tag = 'internal scratch']
  %s0 = inlined_call_operand.hbm [shape: f32[8,32], index: 0, kind: input, shape index: {}]
  %s1 = inlined_call_operand.hbm [shape: f32[8,32], index: 1, kind: input, shape index: {}]
  %s2 = inlined_call_operand.hbm [shape: bf16[8,32], index: 2, kind: output, shape index: {0}]
  %s3 = inlined_call_operand.hbm [shape: bf16[8,32], index: 3, kind: output, shape index: {1}]
  %s4 = inlined_call_operand.vmem [shape: f32[8,1], index: 4, kind: output, shape index: {2}]
  %5 = xla_tuple %s2, %s3, %s4
  %s6 = sld [smem:[#allocation0]]
  $region42: #{tpu_custom_call.1} parent=0
    _
  %s8 = ssub.s32 1, %s6
  %s9 = scalar_select 0, %s8, %s6
  $region1: #{tpu_custom_call.1} parent=0
    #allocation2 [shape = 'u8[4096]{0}', space=vmem, size = 0x1000, scoped, tag = 'input window, operand 0, single buffered']
    #allocation3 [shape = 's32[1]{0}', space=sflag, size = 0x4, scoped, tag = 'scoped memory for tpu_custom_call.1']
    #allocation4 [shape = 's32[1]{0}', space=sflag, size = 0x4, scoped, tag = 'scoped memory for tpu_custom_call.1']
    #allocation5 [shape = 'u8[4096]{0}', space=vmem, size = 0x1000, scoped, tag = 'input window, operand 1, single buffered']
    #allocation6 [shape = 's32[1]{0}', space=sflag, size = 0x4, scoped, tag = 'scoped memory for tpu_custom_call.1']
    #allocation7 [shape = 'u8[2048]{0}', space=vmem, size = 0x800, scoped, tag = 'output window, operand 0, single buffered']
    #allocation8 [shape = 'u8[2048]{0}', space=vmem, size = 0x800, scoped, tag = 'output window, operand 1, single buffered']
    #allocation9 [shape = 's32[1]{0}', space=sflag, size = 0x4, scoped, tag = 'scoped memory for tpu_custom_call.1']
    %10 = vsyncpa [#allocation3], 0
    %11 = vsyncpa [#allocation6], 0
    %12 = vsyncpa [#allocation4], 0
    %13 = vsyncpa [#allocation9], 0
    // Predicated region
    $region2: #{tpu_custom_call.1} parent=1 // pred_check
      _
    $region3: #{tpu_custom_call.1} parent=1 // pred_check_branch
      %15 = sbr.rel (0) target = $region5
    $region4: #{tpu_custom_call.1} parent=1 // pred_region
      %s17 = ssub.s32 128, 128
      %18 = vsyncadd [#allocation3], %s17
      %s20 = sshll.u32 [#allocation2], 4
      %s21 = int_to_ptr.vmem [resolvable:$true] %s20
      %23 = dma.hbm_to_vmem [thread:$0]  %s0, 128, %s21, [#allocation3]
    $region5: #{tpu_custom_call.1} parent=1 // pred_fallthru
      _
    // Predicated region
    $region6: #{tpu_custom_call.1} parent=1 // pred_check
      _
    $region7: #{tpu_custom_call.1} parent=1 // pred_check_branch
      %25 = sbr.rel (0) target = $region9
    $region8: #{tpu_custom_call.1} parent=1 // pred_region
      %s27 = ssub.s32 128, 128
      %28 = vsyncadd [#allocation6], %s27
      %s30 = sshll.u32 [#allocation5], 4
      %s31 = int_to_ptr.vmem [resolvable:$true] %s30
      %33 = dma.hbm_to_vmem [thread:$0]  %s1, 128, %s31, [#allocation6]
    $region9: #{tpu_custom_call.1} parent=1 // pred_fallthru
      _
    // Predicated region
    $region10: #{tpu_custom_call.1} parent=1 // pred_check
      _
    $region11: #{tpu_custom_call.1} parent=1 // pred_check_branch
      %35 = sbr.rel (0) target = $region13
    $region12: #{tpu_custom_call.1} parent=1 // pred_region
      %36 = dma.done [#allocation3], 128
    $region13: #{tpu_custom_call.1} parent=1 // pred_fallthru
      _
    // Predicated region
    $region14: #{tpu_custom_call.1} parent=1 // pred_check
      _
    $region15: #{tpu_custom_call.1} parent=1 // pred_check_branch
      %38 = sbr.rel (0) target = $region17
    $region16: #{tpu_custom_call.1} parent=1 // pred_region
      %39 = dma.done [#allocation6], 128
    $region17: #{tpu_custom_call.1} parent=1 // pred_fallthru
      _
    %v40 = vld [vmem:[#allocation2] sm:$0xff]
    %v41 = vld [vmem:[#allocation5] sm:$0xff]
    %v42 = vmul.f32 %v40, %v40
    %vm43 = vcmask 261120
    %v44 = vsel %vm43, %v42, 0.0
    %45 = vadd.xlane.f32.xlu0 %v44
    %v46 = vpop.xlane.xlu0 %45
    %v47 = vmax.f32 %v46, 1e-24
    %v48 = vrsqrt.pop %v47
    %v49 = vmul.f32 %v41, %v41
    %v50 = vsel %vm43, %v49, 0.0
    %51 = vadd.xlane.f32.xlu0 %v50
    %v52 = vpop.xlane.xlu0 %51
    %v53 = vmax.f32 %v52, 1e-24
    %v54 = vrsqrt.pop %v53
    %v55 = vmul.f32 %v48, 14.285714
    %v56 = vmul.f32 %v40, %v55
    %v57 = vpack.c.bf16 %v56, %v56
    %v58 = vmul.f32 %v41, %v54
    %v59 = vpack.c.bf16 %v58, %v58
    %vm60 = vcmask 257024
    %61 = vst.msk [vmem:[#allocation7] sm:$0xf] %vm60, %v57
    %62 = vst.msk [vmem:[#allocation8] sm:$0xf] %vm60, %v59
    %v63 = vunpack.c.l.bf16 %v57
    %v64 = vunpack.c.l.bf16 %v59
    %v65 = vmul.f32 %v63, %v64
    %v66 = vsel %vm43, %v65, 0.0
    %67 = vadd.xlane.f32.xlu0 %v66
    %v68 = vpop.xlane.xlu0 %67
    %vm69 = vcmask 7168
    %70 = vst.msk [vmem:[%s4] sm:$0xff] %vm69, %v68
    // Predicated region
    $region18: #{tpu_custom_call.1} parent=1 // pred_check
      _
    $region19: #{tpu_custom_call.1} parent=1 // pred_check_branch
      %72 = sbr.rel (0) target = $region21
    $region20: #{tpu_custom_call.1} parent=1 // pred_region
      %s74 = ssub.s32 64, 64
      %75 = vsyncadd [#allocation4], %s74
      %s77 = sshll.u32 [#allocation7], 4
      %s78 = int_to_ptr.vmem [resolvable:$true] %s77
      %80 = dma.vmem_to_hbm [thread:$0]  %s78, 64, %s2, [#allocation4]
    $region21: #{tpu_custom_call.1} parent=1 // pred_fallthru
      _
    // Predicated region
    $region22: #{tpu_custom_call.1} parent=1 // pred_check
      _
    $region23: #{tpu_custom_call.1} parent=1 // pred_check_branch
      %82 = sbr.rel (0) target = $region25
    $region24: #{tpu_custom_call.1} parent=1 // pred_region
      %s84 = ssub.s32 64, 64
      %85 = vsyncadd [#allocation9], %s84
      %s87 = sshll.u32 [#allocation8], 4
      %s88 = int_to_ptr.vmem [resolvable:$true] %s87
      %90 = dma.vmem_to_hbm [thread:$0]  %s88, 64, %s3, [#allocation9]
    $region25: #{tpu_custom_call.1} parent=1 // pred_fallthru
      _
    // Predicated region
    $region26: #{tpu_custom_call.1} parent=1 // pred_check
      _
    $region27: #{tpu_custom_call.1} parent=1 // pred_check_branch
      %92 = sbr.rel (0) target = $region29
    $region28: #{tpu_custom_call.1} parent=1 // pred_region
      _
    $region29: #{tpu_custom_call.1} parent=1 // pred_fallthru
      _
    // Predicated region
    $region30: #{tpu_custom_call.1} parent=1 // pred_check
      _
    $region31: #{tpu_custom_call.1} parent=1 // pred_check_branch
      %94 = sbr.rel (0) target = $region33
    $region32: #{tpu_custom_call.1} parent=1 // pred_region
      %95 = dma.done [#allocation4], 64
    $region33: #{tpu_custom_call.1} parent=1 // pred_fallthru
      _
    // Predicated region
    $region34: #{tpu_custom_call.1} parent=1 // pred_check
      _
    $region35: #{tpu_custom_call.1} parent=1 // pred_check_branch
      %97 = sbr.rel (0) target = $region37
    $region36: #{tpu_custom_call.1} parent=1 // pred_region
      %98 = dma.done [#allocation9], 64
    $region37: #{tpu_custom_call.1} parent=1 // pred_fallthru
      _
    // Predicated region
    $region38: #{tpu_custom_call.1} parent=1 // pred_check
      _
    $region39: #{tpu_custom_call.1} parent=1 // pred_check_branch
      %100 = sbr.rel (0) target = $region41
    $region40: #{tpu_custom_call.1} parent=1 // pred_region
      _
    $region41: #{tpu_custom_call.1} parent=1 // pred_fallthru
      _
    %101 = vsyncpa [#allocation3], 1
    %102 = vsyncpa [#allocation6], 1
    %103 = vsyncpa [#allocation4], 1
    %104 = vsyncpa [#allocation9], 1

</llo_original>
